<compile_context>
chip_gen: v7x
topology: tpu7x:2x2x1
jax: 0.10.0
libtpu: 0.0.40
codegen_flags: <defaults>
</compile_context>

<pallas_src>
import functools
import math

import jax
import jax.numpy as jnp
from jax.experimental import pallas as pl
from jax.experimental.pallas import tpu as pltpu

_LANES = 128
_SUBLANES = 8


def _round_up(x, m):
    return ((x + m - 1) // m) * m


def _focal_elementwise(x, t, *, alpha, gamma, logits):
    """Per-element focal loss in f32. Mirrors the PyTorch forward exactly."""
    if logits:
        # Numerically stable BCE-with-logits: max(x,0) - x*t + log(1 + exp(-|x|))
        bce = jnp.maximum(x, 0.0) - x * t + jnp.log1p(jnp.exp(-jnp.abs(x)))
    else:
        # F.binary_cross_entropy clamps the log terms at -100 (PyTorch semantics).
        log_p = jnp.maximum(jnp.log(x), -100.0)
        log_1mp = jnp.maximum(jnp.log1p(-x), -100.0)
        bce = -(t * log_p + (1.0 - t) * log_1mp)
    pt = jnp.exp(-bce)
    one_minus_pt = 1.0 - pt
    g = float(gamma)
    if g == int(g) and 0.0 <= g <= 8.0:
        # Small integer exponent: static unrolled multiplies (stays on the VPU,
        # avoids pow -> exp/log round trip).
        w = jnp.ones_like(one_minus_pt)
        for _ in range(int(g)):
            w = w * one_minus_pt
    else:
        w = jnp.power(one_minus_pt, g)  # EUP path
    return alpha * w * bce


def _focal_sum_kernel(x_ref, t_ref, o_ref, acc_ref, *,
                      alpha, gamma, logits, n_valid, n_total, inv_n, tile_rows):
    """Reduced (mean) focal loss. acc_ref is a (1,1) f32 VMEM accumulator."""
    i = pl.program_id(0)

    @pl.when(i == 0)
    def _():
        acc_ref[...] = jnp.zeros_like(acc_ref)

    x = x_ref[...].astype(jnp.float32)   # (tile_rows, 128) lane-dense tile
    t = t_ref[...].astype(jnp.float32)
    fl = _focal_elementwise(x, t, alpha=alpha, gamma=gamma, logits=logits)

    if n_valid != n_total:
        # Mask out the tail padding (only present when numel % 1024-ish != 0).
        row = jax.lax.broadcasted_iota(jnp.int32, fl.shape, 0)
        col = jax.lax.broadcasted_iota(jnp.int32, fl.shape, 1)
        idx = (i * tile_rows + row) * _LANES + col
        fl = jnp.where(idx < n_valid, fl, 0.0)

    acc_ref[...] += jnp.sum(fl)

    @pl.when(i == pl.num_programs(0) - 1)
    def _():
        # Mean = sum * (1/N); 1/N is a trace-time constant (no in-kernel divide).
        o_ref[...] = (acc_ref[...] * inv_n).astype(o_ref.dtype)


def _focal_elem_kernel(x_ref, t_ref, o_ref, *, alpha, gamma, logits):
    """Unreduced focal loss: one lane-dense store per tile."""
    x = x_ref[...].astype(jnp.float32)
    t = t_ref[...].astype(jnp.float32)
    fl = _focal_elementwise(x, t, alpha=alpha, gamma=gamma, logits=logits)
    o_ref[...] = fl.astype(o_ref.dtype)


def focal_loss(inputs, targets, *, alpha=1.0, gamma=2.0, logits=False,
               reduce=True, max_tile_rows=512):
    """Pallas TPU implementation of FocalLoss.forward(inputs, targets)."""
    assert inputs.shape == targets.shape, "inputs/targets shape mismatch"
    orig_shape = inputs.shape
    n = int(math.prod(orig_shape))

    rows = -(-n // _LANES)                                   # ceil(n / 128)
    tile_rows = min(max_tile_rows, _round_up(rows, _SUBLANES))
    rows_padded = _round_up(rows, tile_rows)
    n_total = rows_padded * _LANES
    grid = (rows_padded // tile_rows,)

    # Flatten + pad to a lane-dense (rows_padded, 128) slab. Pad values are
    # chosen so the padded focal-loss values stay finite (they are masked /
    # sliced away anyway).
    pad_x = 0.0 if logits else 0.5
    pad_t = 0.0 if logits else 0.5
    x_flat = jnp.pad(inputs.reshape(-1).astype(jnp.float32),
                     (0, n_total - n), constant_values=pad_x).reshape(rows_padded, _LANES)
    t_flat = jnp.pad(targets.reshape(-1).astype(jnp.float32),
                     (0, n_total - n), constant_values=pad_t).reshape(rows_padded, _LANES)

    tile_spec = pl.BlockSpec((tile_rows, _LANES), lambda i: (i, 0))

    if reduce:
        kernel = functools.partial(
            _focal_sum_kernel, alpha=float(alpha), gamma=float(gamma),
            logits=bool(logits), n_valid=n, n_total=n_total,
            inv_n=1.0 / float(n), tile_rows=tile_rows)
        out = pl.pallas_call(
            kernel,
            out_shape=jax.ShapeDtypeStruct((1, 1), jnp.float32),
            grid_spec=pltpu.PrefetchScalarGridSpec(
                num_scalar_prefetch=0,
                grid=grid,
                in_specs=[tile_spec, tile_spec],
                out_specs=pl.BlockSpec((1, 1), lambda i: (0, 0)),
                scratch_shapes=[pltpu.VMEM((1, 1), jnp.float32)],
            ),
            compiler_params=pltpu.CompilerParams(
                dimension_semantics=("arbitrary",)),   # accumulator carried
        )(x_flat, t_flat)
        return out[0, 0]

    kernel = functools.partial(
        _focal_elem_kernel, alpha=float(alpha), gamma=float(gamma),
        logits=bool(logits))
    out = pl.pallas_call(
        kernel,
        out_shape=jax.ShapeDtypeStruct((rows_padded, _LANES), jnp.float32),
        grid_spec=pltpu.PrefetchScalarGridSpec(
            num_scalar_prefetch=0,
            grid=grid,
            in_specs=[tile_spec, tile_spec],
            out_specs=tile_spec,
        ),
        compiler_params=pltpu.CompilerParams(
            dimension_semantics=("parallel",)),
    )(x_flat, t_flat)
    return out.reshape(-1)[:n].reshape(orig_shape).astype(inputs.dtype)


def _reference(inputs, targets, *, alpha=1.0, gamma=2.0, logits=False, reduce=True):
    """Pure-JAX reference mirroring the PyTorch forward exactly."""
    x = inputs.astype(jnp.float32)
    t = targets.astype(jnp.float32)
    if logits:
        bce = jnp.maximum(x, 0.0) - x * t + jnp.log1p(jnp.exp(-jnp.abs(x)))
    else:
        bce = -(t * jnp.maximum(jnp.log(x), -100.0)
                + (1.0 - t) * jnp.maximum(jnp.log1p(-x), -100.0))
    pt = jnp.exp(-bce)
    fl = alpha * (1.0 - pt) ** gamma * bce
    return jnp.mean(fl) if reduce else fl


if __name__ == "__main__":
    # Small shapes consistent with the module (it is shape-agnostic /
    # elementwise): batch=2, channels=4, spatial=16x16.
    shape = (2, 4, 16, 16)
    key = jax.random.PRNGKey(0)
    k1, k2 = jax.random.split(key)

    raw = jax.random.normal(k1, shape, dtype=jnp.float32)
    probs = jax.nn.sigmoid(raw)                                     # inputs in (0, 1)
    targets = (jax.random.uniform(k2, shape) > 0.5).astype(jnp.float32)

    # Default module config: alpha=1, gamma=2, logits=False, reduce=True.
    out = focal_loss(probs, targets)
    out = jax.block_until_ready(out)
    ref = _reference(probs, targets)
    assert out.shape == ()
    assert jnp.allclose(out, ref, atol=1e-5, rtol=1e-5), "reduce=True mismatch"

    # reduce=False path (elementwise focal loss).
    out_elem = jax.block_until_ready(focal_loss(probs, targets, reduce=False))
    ref_elem = _reference(probs, targets, reduce=False)
    assert out_elem.shape == shape
    assert jnp.allclose(out_elem, ref_elem, atol=1e-5, rtol=1e-5), "reduce=False mismatch"

    # logits=True path (BCE-with-logits).
    out_lg = jax.block_until_ready(focal_loss(raw, targets, logits=True))
    ref_lg = _reference(raw, targets, logits=True)
    assert jnp.allclose(out_lg, ref_lg, atol=1e-5, rtol=1e-5), "logits=True mismatch"

    print("KERNEL_OK")
</pallas_src>

<mosaic_0001>
module attributes {stable_mosaic.version = 11 : i64} {
  func.func @_focal_sum_kernel(%arg0: i32, %arg1: memref<16x128xf32, #tpu.memory_space<vmem>>, %arg2: memref<16x128xf32, #tpu.memory_space<vmem>>, %arg3: memref<1x1xf32, #tpu.memory_space<vmem>>, %arg4: memref<1x1xf32, #tpu.memory_space<vmem>>) attributes {dimension_semantics = [#tpu.dimension_semantics<arbitrary>], iteration_bounds = array<i64: 1>, scalar_prefetch = 0 : i64, scratch_operands = 1 : i64, tpu.core_type = #tpu.core_type<tc>, window_params = [{transform_indices = @transform_0, window_bounds = array<i64: 16, 128>}, {transform_indices = @transform_1, window_bounds = array<i64: 16, 128>}, {pipeline_mode = #tpu.pipeline_mode<synchronous>, transform_indices = @transform_2, window_bounds = array<i64: 1, 1>}]} {
    %c0_i32 = arith.constant 0 : i32
    %0 = arith.cmpi eq, %arg0, %c0_i32 : i32
    %1 = arith.extui %0 : i1 to i32
    %c0_i32_0 = arith.constant 0 : i32
    %2 = arith.cmpi ne, %1, %c0_i32_0 : i32
    scf.if %2 {
      %cst_19 = arith.constant 0.000000e+00 : f32
      %42 = vector.broadcast %cst_19 : f32 to vector<1x1xf32>
      %c0_20 = arith.constant 0 : index
      %c0_21 = arith.constant 0 : index
      %43 = vector.load %arg4[%c0_20, %c0_21] : memref<1x1xf32, #tpu.memory_space<vmem>>, vector<1x1xf32>
      tpu.vector_store %arg4[%c0_20, %c0_21], %42 {strides = array<i32>} : memref<1x1xf32, #tpu.memory_space<vmem>>, vector<1x1xf32>,
    } else {
    }
    %c0 = arith.constant 0 : index
    %c0_1 = arith.constant 0 : index
    %3 = vector.load %arg1[%c0, %c0_1] : memref<16x128xf32, #tpu.memory_space<vmem>>, vector<16x128xf32>
    %c0_2 = arith.constant 0 : index
    %c0_3 = arith.constant 0 : index
    %4 = vector.load %arg2[%c0_2, %c0_3] : memref<16x128xf32, #tpu.memory_space<vmem>>, vector<16x128xf32>
    %5 = math.log %3 : vector<16x128xf32>
    %cst = arith.constant -1.000000e+02 : f32
    %6 = vector.broadcast %cst : f32 to vector<16x128xf32>
    %7 = arith.maximumf %5, %6 : vector<16x128xf32>
    %cst_4 = arith.constant 0.000000e+00 : f32
    %8 = vector.broadcast %cst_4 : f32 to vector<16x128xf32>
    %9 = arith.subf %8, %3 : vector<16x128xf32>
    %10 = math.log1p %9 : vector<16x128xf32>
    %cst_5 = arith.constant -1.000000e+02 : f32
    %11 = vector.broadcast %cst_5 : f32 to vector<16x128xf32>
    %12 = arith.maximumf %10, %11 : vector<16x128xf32>
    %13 = arith.mulf %4, %7 : vector<16x128xf32>
    %cst_6 = arith.constant 1.000000e+00 : f32
    %14 = vector.broadcast %cst_6 : f32 to vector<16x128xf32>
    %15 = arith.subf %14, %4 : vector<16x128xf32>
    %16 = arith.mulf %15, %12 : vector<16x128xf32>
    %17 = arith.addf %13, %16 : vector<16x128xf32>
    %cst_7 = arith.constant 0.000000e+00 : f32
    %18 = vector.broadcast %cst_7 : f32 to vector<16x128xf32>
    %19 = arith.subf %18, %17 : vector<16x128xf32>
    %cst_8 = arith.constant 0.000000e+00 : f32
    %20 = vector.broadcast %cst_8 : f32 to vector<16x128xf32>
    %21 = arith.subf %20, %19 : vector<16x128xf32>
    %22 = math.exp %21 : vector<16x128xf32>
    %cst_9 = arith.constant 1.000000e+00 : f32
    %23 = vector.broadcast %cst_9 : f32 to vector<16x128xf32>
    %24 = arith.subf %23, %22 : vector<16x128xf32>
    %cst_10 = arith.constant 1.000000e+00 : f32
    %25 = vector.broadcast %cst_10 : f32 to vector<16x128xf32>
    %26 = arith.mulf %25, %24 : vector<16x128xf32>
    %27 = arith.mulf %26, %24 : vector<16x128xf32>
    %cst_11 = arith.constant 1.000000e+00 : f32
    %28 = vector.broadcast %cst_11 : f32 to vector<16x128xf32>
    %29 = arith.mulf %28, %27 : vector<16x128xf32>
    %30 = arith.mulf %29, %19 : vector<16x128xf32>
    %c0_12 = arith.constant 0 : index
    %c0_13 = arith.constant 0 : index
    %31 = vector.load %arg4[%c0_12, %c0_13] : memref<1x1xf32, #tpu.memory_space<vmem>>, vector<1x1xf32>
    %32 = vector.shape_cast %30 : vector<16x128xf32> to vector<1x16x128xf32>
    %cst_14 = arith.constant dense<0.000000e+00> : vector<1xf32>
    %33 = vector.multi_reduction <add>, %32, %cst_14 [1, 2] : vector<1x16x128xf32> to vector<1xf32>
    %34 = vector.shape_cast %33 : vector<1xf32> to vector<1x1x1xf32>
    %35 = vector.extract %34[0, 0, 0] : f32 from vector<1x1x1xf32>
    %36 = vector.broadcast %35 : f32 to vector<1x1xf32>
    %37 = arith.addf %31, %36 : vector<1x1xf32>
    %c0_15 = arith.constant 0 : index
    %c0_16 = arith.constant 0 : index
    %38 = vector.load %arg4[%c0_15, %c0_16] : memref<1x1xf32, #tpu.memory_space<vmem>>, vector<1x1xf32>
    tpu.vector_store %arg4[%c0_15, %c0_16], %37 {strides = array<i32>} : memref<1x1xf32, #tpu.memory_space<vmem>>, vector<1x1xf32>,
    %c0_i32_17 = arith.constant 0 : i32
    %39 = arith.cmpi eq, %arg0, %c0_i32_17 : i32
    %40 = arith.extui %39 : i1 to i32
    %c0_i32_18 = arith.constant 0 : i32
    %41 = arith.cmpi ne, %40, %c0_i32_18 : i32
    scf.if %41 {
      %c0_19 = arith.constant 0 : index
      %c0_20 = arith.constant 0 : index
      %42 = vector.load %arg4[%c0_19, %c0_20] : memref<1x1xf32, #tpu.memory_space<vmem>>, vector<1x1xf32>
      %cst_21 = arith.constant 4.8828125E-4 : f32
      %43 = vector.broadcast %cst_21 : f32 to vector<1x1xf32>
      %44 = arith.mulf %42, %43 : vector<1x1xf32>
      %c0_22 = arith.constant 0 : index
      %c0_23 = arith.constant 0 : index
      %45 = vector.load %arg3[%c0_22, %c0_23] : memref<1x1xf32, #tpu.memory_space<vmem>>, vector<1x1xf32>
      tpu.vector_store %arg3[%c0_22, %c0_23], %44 {strides = array<i32>} : memref<1x1xf32, #tpu.memory_space<vmem>>, vector<1x1xf32>,
    } else {
    }
    return
  }
  func.func @transform_0(%arg0: i32) -> (i32, i32) {
    %c0_i32 = arith.constant 0 : i32
    %c0_i32_0 = arith.constant 0 : i32
    return %arg0, %c0_i32 : i32, i32
  }
  func.func @transform_1(%arg0: i32) -> (i32, i32) {
    %c0_i32 = arith.constant 0 : i32
    %c0_i32_0 = arith.constant 0 : i32
    return %arg0, %c0_i32 : i32, i32
  }
  func.func @transform_2(%arg0: i32) -> (i32, i32) {
    %c0_i32 = arith.constant 0 : i32
    %c0_i32_0 = arith.constant 0 : i32
    %c0_i32_1 = arith.constant 0 : i32
    return %c0_i32, %c0_i32_0 : i32, i32
  }
}

</mosaic_0001>

<llo_original>
// kernel: tpu_custom_call.1
$region0: #{tpu_custom_call.1}
  #allocation0 [shape = 'u32[]', space=smem, size = 0x4, offset = 0x4, fixed_abs, tag = 'smem constant byte address 0x4 - core index']
  #allocation1 [shape = 'u32[144,128]{1,0:T(1,128)}', space=vmem, size = 0x12000, scoped, tag = 'internal scratch']
  #allocation2 [shape = 'f32[1,1]{1,0:T(1,128)}', space=vmem, size = 0x200, scoped, tag = 'scratch operand']
  %s0 = inlined_call_operand.hbm [shape: f32[16,128], index: 0, kind: input, shape index: {}]
  %s1 = inlined_call_operand.hbm [shape: f32[16,128], index: 1, kind: input, shape index: {}]
  %s2 = inlined_call_operand.hbm [shape: f32[1,1], index: 2, kind: output, shape index: {}]
  %s3 = sld [smem:[#allocation0]]
  $region34: #{tpu_custom_call.1} parent=0
    _
  %s5 = ssub.s32 1, %s3
  %s6 = scalar_select 0, %s5, %s3
  $region1: #{tpu_custom_call.1} parent=0
    #allocation3 [shape = 'u8[8192]{0}', space=vmem, size = 0x2000, scoped, tag = 'input window, operand 0, single buffered']
    #allocation4 [shape = 's32[1]{0}', space=sflag, size = 0x4, scoped, tag = 'scoped memory for tpu_custom_call.1']
    #allocation5 [shape = 's32[1]{0}', space=sflag, size = 0x4, scoped, tag = 'scoped memory for tpu_custom_call.1']
    #allocation6 [shape = 'u8[8192]{0}', space=vmem, size = 0x2000, scoped, tag = 'input window, operand 1, single buffered']
    #allocation7 [shape = 's32[1]{0}', space=sflag, size = 0x4, scoped, tag = 'scoped memory for tpu_custom_call.1']
    #allocation8 [shape = 'u8[512]{0}', space=vmem, size = 0x400, scoped, tag = 'output window, operand 0, single buffered']
    %7 = vsyncpa [#allocation4], 0
    %8 = vsyncpa [#allocation7], 0
    %9 = vsyncpa [#allocation5], 0
    // Predicated region
    $region2: #{tpu_custom_call.1} parent=1 // pred_check
      _
    $region3: #{tpu_custom_call.1} parent=1 // pred_check_branch
      %11 = sbr.rel (0) target = $region5
    $region4: #{tpu_custom_call.1} parent=1 // pred_region
      %s13 = ssub.s32 256, 256
      %14 = vsyncadd [#allocation4], %s13
      %s15 = sshll.u32 [#allocation3], 4
      %s16 = int_to_ptr.vmem [resolvable:$true] %s15
      %21 = dma.hbm_to_vmem [thread:$0]  %s0, 256, %s16, [#allocation4], 128, 128, 8
    $region5: #{tpu_custom_call.1} parent=1 // pred_fallthru
      _
    // Predicated region
    $region6: #{tpu_custom_call.1} parent=1 // pred_check
      _
    $region7: #{tpu_custom_call.1} parent=1 // pred_check_branch
      %23 = sbr.rel (0) target = $region9
    $region8: #{tpu_custom_call.1} parent=1 // pred_region
      %s25 = ssub.s32 256, 256
      %26 = vsyncadd [#allocation7], %s25
      %s27 = sshll.u32 [#allocation6], 4
      %s28 = int_to_ptr.vmem [resolvable:$true] %s27
      %33 = dma.hbm_to_vmem [thread:$0]  %s1, 256, %s28, [#allocation7], 128, 128, 8
    $region9: #{tpu_custom_call.1} parent=1 // pred_fallthru
      _
    // Predicated region
    $region10: #{tpu_custom_call.1} parent=1 // pred_check
      _
    $region11: #{tpu_custom_call.1} parent=1 // pred_check_branch
      %35 = sbr.rel (0) target = $region13
    $region12: #{tpu_custom_call.1} parent=1 // pred_region
      %36 = dma.done [#allocation4], 256
    $region13: #{tpu_custom_call.1} parent=1 // pred_fallthru
      _
    // Predicated region
    $region14: #{tpu_custom_call.1} parent=1 // pred_check
      _
    $region15: #{tpu_custom_call.1} parent=1 // pred_check_branch
      %38 = sbr.rel (0) target = $region17
    $region16: #{tpu_custom_call.1} parent=1 // pred_region
      %39 = dma.done [#allocation7], 256
    $region17: #{tpu_custom_call.1} parent=1 // pred_fallthru
      _
    %p40 = scmp.eq.s32.totalorder 0, 0
    // Predicated region
    $region18: #{tpu_custom_call.1} parent=1 // pred_check
      %p41 = pneg %p40
    $region19: #{tpu_custom_call.1} parent=1 // pred_check_branch
      %43 = sbr.rel (%p41) target = $region21
    $region20: #{tpu_custom_call.1} parent=1 // pred_region
      %vm44 = vcmask 0
      %45 = vst.msk [vmem:[#allocation2] sm:$0x1] %vm44, 0.0
    $region21: #{tpu_custom_call.1} parent=1 // pred_fallthru
      _
    %v46 = vld [vmem:[#allocation3] sm:$0xff]
    %v47 = vld [vmem:[#allocation3 + $0x8] sm:$0xff]
    %v48 = vld [vmem:[#allocation6] sm:$0xff]
    %v49 = vld [vmem:[#allocation6 + $0x8] sm:$0xff]
    %v50 = vlog2.pop %v46
    %v51 = vmul.f32 %v50, 0.6931472
    %v52 = vlog2.pop %v47
    %v53 = vmul.f32 %v52, 0.6931472
    %v54 = vmax.f32 %v51, -100.0
    %v55 = vmax.f32 %v53, -100.0
    %v56 = vsub.f32 0.0, %v46
    %v57 = vsub.f32 0.0, %v47
    %v58 = vadd.f32 %v56, 1.0
    %v59 = vlog2.pop %v58
    %v60 = vmul.f32 %v59, 0.6931472
    %v61 = vmul.f32 -0.5, %v56
    %v62 = vadd.f32 %v61, 1.0
    %v63 = vmul.f32 %v62, %v56
    %v64 = vand.u32 2147483647, %v56
    %vm65 = vcmp.lt.f32.partialorder %v64, 0.0004427343
    %v66 = vsel %vm65, %v63, %v60
    %v67 = vadd.f32 %v57, 1.0
    %v68 = vlog2.pop %v67
    %v69 = vmul.f32 %v68, 0.6931472
    %v70 = vmul.f32 -0.5, %v57
    %v71 = vadd.f32 %v70, 1.0
    %v72 = vmul.f32 %v71, %v57
    %v73 = vand.u32 2147483647, %v57
    %vm74 = vcmp.lt.f32.partialorder %v73, 0.0004427343
    %v75 = vsel %vm74, %v72, %v69
    %v76 = vmax.f32 %v66, -100.0
    %v77 = vmax.f32 %v75, -100.0
    %v78 = vmul.f32 %v48, %v54
    %v79 = vmul.f32 %v49, %v55
    %v80 = vsub.f32 1.0, %v48
    %v81 = vsub.f32 1.0, %v49
    %v82 = vmul.f32 %v80, %v76
    %v83 = vmul.f32 %v81, %v77
    %v84 = vadd.f32 %v78, %v82
    %v85 = vadd.f32 %v79, %v83
    %v86 = vsub.f32 0.0, %v84
    %v87 = vsub.f32 0.0, %v85
    %v88 = vsub.f32 0.0, %v86
    %v89 = vsub.f32 0.0, %v87
    %v90 = vmul.f32 %v88, 1.442695
    %v91 = vpow.pop %v90
    %v92 = vmul.f32 %v89, 1.442695
    %v93 = vpow.pop %v92
    %v94 = vsub.f32 1.0, %v91
    %v95 = vsub.f32 1.0, %v93
    %v96 = vmul.f32 %v94, %v94
    %v97 = vmul.f32 %v95, %v95
    %v98 = vmul.f32 %v96, %v86
    %v99 = vmul.f32 %v97, %v87
    %v100 = vld [vmem:[#allocation2] sm:$0x1]
    %v101 = vadd.f32 %v98, %v99
    %102 = vadd.xlane.f32.xlu0 %v101
    %v103 = vpop.xlane.xlu0 %102
    %v104 = vrot.slane %v103, 4
    %v105 = vadd.f32 %v103, %v104
    %v106 = vrot.slane %v105, 2
    %v107 = vadd.f32 %v105, %v106
    %v108 = vrot.slane %v107, 1
    %v109 = vadd.f32 %v107, %v108
    %s110 = vtos %v109
    %v111 = vstv %s110
    %v112 = vadd.f32 %v100, %v111
    %vm113 = vcmask 0
    %114 = vst.msk [vmem:[#allocation2] sm:$0x1] %vm113, %v112
    // Predicated region
    $region22: #{tpu_custom_call.1} parent=1 // pred_check
      %p115 = pneg %p40
    $region23: #{tpu_custom_call.1} parent=1 // pred_check_branch
      %117 = sbr.rel (%p115) target = $region25
    $region24: #{tpu_custom_call.1} parent=1 // pred_region
      %v118 = vld [vmem:[#allocation2] sm:$0x1]
      %v119 = vmul.f32 %v118, 0.00048828125
      %120 = vst.msk [vmem:[#allocation8] sm:$0x1] %vm113, %v119
    $region25: #{tpu_custom_call.1} parent=1 // pred_fallthru
      _
    // Predicated region
    $region26: #{tpu_custom_call.1} parent=1 // pred_check
      _
    $region27: #{tpu_custom_call.1} parent=1 // pred_check_branch
      %122 = sbr.rel (0) target = $region29
    $region28: #{tpu_custom_call.1} parent=1 // pred_region
      %s124 = ssub.s32 16, 16
      %125 = vsyncadd [#allocation5], %s124
      %s127 = sshll.u32 [#allocation8], 4
      %s128 = int_to_ptr.vmem [resolvable:$true] %s127
      %130 = dma.vmem_to_hbm [thread:$0]  %s128, 16, %s2, [#allocation5]
    $region29: #{tpu_custom_call.1} parent=1 // pred_fallthru
      _
    // Predicated region
    $region30: #{tpu_custom_call.1} parent=1 // pred_check
      _
    $region31: #{tpu_custom_call.1} parent=1 // pred_check_branch
      %132 = sbr.rel (0) target = $region33
    $region32: #{tpu_custom_call.1} parent=1 // pred_region
      %133 = dma.done [#allocation5], 16
    $region33: #{tpu_custom_call.1} parent=1 // pred_fallthru
      _
    %134 = vsyncpa [#allocation4], 1
    %135 = vsyncpa [#allocation7], 1
    %136 = vsyncpa [#allocation5], 1

</llo_original>
